<compile_context>
chip_gen: v6e
topology: v6e:2x2x1
jax: 0.10.0
libtpu: 0.0.40
codegen_flags: <defaults>
</compile_context>

<pallas_src>
import functools

import jax
import jax.numpy as jnp
from jax import lax
from jax.experimental import pallas as pl
from jax.experimental.pallas import tpu as pltpu


# ---------------------------------------------------------------------------
# Kernels
# ---------------------------------------------------------------------------
def _conv1d_kernel_single(x_ref, w_ref, b_ref, o_ref):
    """Collapsed-K path: one dot per output tile, bias folded in, no scratch."""
    o_ref[...] = (
        jnp.dot(x_ref[...], w_ref[...], preferred_element_type=jnp.float32)
        + b_ref[...].astype(jnp.float32)
    ).astype(o_ref.dtype)


def _make_conv1d_kernel_multi(n_k, k_rem):
    """Accumulate-over-K path.  `n_k`, `k_rem` are static Python ints.

    If k_rem != 0 the masked dot runs ONLY on the last K step (pl.when); all
    other steps are a plain MXU dot with no VALU masking work.
    """
    last = n_k - 1

    def kernel(x_ref, w_ref, b_ref, o_ref, acc_ref):
        k = pl.program_id(2)

        def accumulate(p):
            @pl.when(k == 0)
            def _():
                # init with first partial product + bias: no zero-fill pass,
                # no epilogue add.
                acc_ref[...] = p + b_ref[...].astype(jnp.float32)

            @pl.when(k > 0)
            def _():
                acc_ref[...] += p

        if k_rem == 0:
            accumulate(
                jnp.dot(x_ref[...], w_ref[...], preferred_element_type=jnp.float32)
            )
        else:
            @pl.when(k < last)
            def _():
                accumulate(
                    jnp.dot(x_ref[...], w_ref[...], preferred_element_type=jnp.float32)
                )

            @pl.when(k == last)
            def _():
                # Only the K tail pays for masking (padded VMEM contents must
                # not leak into the sum).
                x = x_ref[...]
                w = w_ref[...]
                kx = lax.broadcasted_iota(jnp.int32, x.shape, 1)
                kw = lax.broadcasted_iota(jnp.int32, w.shape, 0)
                x = jnp.where(kx < k_rem, x, jnp.zeros_like(x))
                w = jnp.where(kw < k_rem, w, jnp.zeros_like(w))
                accumulate(jnp.dot(x, w, preferred_element_type=jnp.float32))

        @pl.when(k == last)
        def _():
            o_ref[...] = acc_ref[...].astype(o_ref.dtype)

    return kernel


# ---------------------------------------------------------------------------
# Generation-aware VMEM budget & tile derivation
# ---------------------------------------------------------------------------
def _rd(x, m):
    return max(m, (x // m) * m)


def _ru(x, m):
    return ((x + m - 1) // m) * m


def _tpu_params():
    """(tile_budget_bytes, vmem_limit_bytes, num_cores, is_v6)."""
    kind = ""
    try:
        kind = jax.devices()[0].device_kind.lower()
    except Exception:
        pass

    vmem_bytes = None
    try:
        vmem_bytes = getattr(pltpu.get_tpu_info(), "vmem_capacity_bytes", None)
    except Exception:
        vmem_bytes = None
    if not vmem_bytes:
        # Conservative fallback: assume v7x-sized VMEM (64 MiB) unless the
        # device kind clearly says otherwise.
        if kind and ("v7" not in kind):
            vmem_bytes = 128 * 1024 * 1024
        else:
            vmem_bytes = 64 * 1024 * 1024

    vmem_limit = (vmem_bytes * 3) // 4              # 96 MiB on v5e/v6e, 48 on v7x
    tile_budget = vmem_limit - 8 * 1024 * 1024      # headroom for compiler scratch
    num_cores = 2 if "v7" in kind else 1
    is_v6 = "v6" in kind
    return tile_budget, vmem_limit, num_cores, is_v6


def _largest_aligned_divisor(K, cap):
    """Largest d <= cap with d % 128 == 0 and K % d == 0, else None."""
    best = None
    d = 128
    while d <= cap:
        if K % d == 0:
            best = d
        d += 128
    return best


def _choose_tiles(M, N, K, itemsize, out_itemsize, budget, num_cores, is_v6):
    # Generation-aware targets (128/256-aligned, MXU friendly).
    if num_cores >= 2:                       # v7x: halved VMEM -> hard cap
        tm_t, tn_t, tk_t = 1024, 1024, 512
    elif is_v6 and itemsize < 4:             # v6e bf16: highest compute/BW ratio
        tm_t, tn_t, tk_t = 1536, 1536, 1024
    else:
        tm_t, tn_t, tk_t = 1024, 1024, (512 if itemsize >= 4 else 1024)

    tm = M if M <= tm_t else tm_t
    tn = N if N <= tn_t else tn_t

    def fits(tm_, tn_, tk_, single_k):
        in_b = 2 * (tm_ * tk_ + tk_ * tn_ + tn_) * itemsize   # double-buffered
        out_b = 2 * tm_ * tn_ * out_itemsize
        acc_b = 0 if single_k else tm_ * tn_ * 4
        return in_b + out_b + acc_b <= budget

    # Weight-resident / collapsed-K branch: no accumulator, no masking, no K
    # re-streaming of W.  Dominant win for MLP-sized layers on every gen.
    if fits(tm, tn, K, single_k=True):
        tk = K
    else:
        if K <= tk_t:
            tk = K
        else:
            # Prefer a 128-aligned tk that divides K -> no tail mask at all.
            tk = _largest_aligned_divisor(K, tk_t) or tk_t
        for _ in range(32):
            if fits(tm, tn, tk, single_k=(tk == K)):
                break
            if tk > 128:                     # shrink K first (only adds steps)
                tk = _rd(tk // 2, 128)
            elif tm > 256:
                tm = _rd(tm // 2, 8)
            elif tn > 128:
                tn = _rd(tn // 2, 128)
            else:
                break

    # v7x: both TensorCores need work -> guarantee >= 2 blocks on the parallel
    # (i, j) grid.
    if num_cores >= 2 and pl.cdiv(M, tm) * pl.cdiv(N, tn) < 2:
        if M >= 16:
            tm = _ru(pl.cdiv(M, 2), 8)
        elif N >= 256:
            tn = _ru(pl.cdiv(N, 2), 128)

    return tm, tn, tk


# ---------------------------------------------------------------------------
# Public wrapper
# ---------------------------------------------------------------------------
@functools.partial(jax.jit, static_argnames=("tm", "tn", "tk", "compute_dtype"))
def conv1d(x, weight, bias, *, tm=None, tn=None, tk=None, compute_dtype=None):
    """y = x @ weight + bias with x: (..., nx), weight: (nx, nf), bias: (nf,).

    compute_dtype: MXU input dtype.  Default keeps the input dtype (bit-exact
    vs. the f32 reference).  Strongly recommended for f32 inputs on v5e/v6e/v7x:
    compute_dtype=jnp.bfloat16 (f32 accumulation, ~2-4x MXU throughput, half
    the DMA bytes; expect ~1e-2 relative error).
    """
    *lead, nx = x.shape
    nf = weight.shape[-1]
    out_dtype = x.dtype

    cdt = jnp.dtype(compute_dtype) if compute_dtype is not None else jnp.dtype(x.dtype)
    x2d = x.reshape(-1, nx).astype(cdt)
    w = weight.astype(cdt)
    b2d = bias.reshape(1, nf).astype(jnp.float32)
    M = x2d.shape[0]

    tile_budget, vmem_limit, num_cores, is_v6 = _tpu_params()
    a_tm, a_tn, a_tk = _choose_tiles(
        M, nf, nx, cdt.itemsize, jnp.dtype(out_dtype).itemsize,
        tile_budget, num_cores, is_v6,
    )
    tm = tm or a_tm
    tn = tn or a_tn
    tk = tk or a_tk

    n_k = pl.cdiv(nx, tk)
    k_rem = nx % tk                       # static; masked only on the last K step
    single_k = n_k == 1

    cost = pl.CostEstimate(
        flops=2 * M * nx * nf,
        transcendentals=0,
        bytes_accessed=(
            x2d.size * cdt.itemsize
            + w.size * cdt.itemsize
            + b2d.size * 4
            + M * nf * jnp.dtype(out_dtype).itemsize
        ),
    )

    if single_k:
        kernel = _conv1d_kernel_single
        grid = (pl.cdiv(M, tm), pl.cdiv(nf, tn))
        in_specs = [
            pl.BlockSpec((tm, nx), lambda i, j: (i, 0)),   # x tile (K resident)
            pl.BlockSpec((nx, tn), lambda i, j: (0, j)),   # W tile (K resident)
            pl.BlockSpec((1, tn), lambda i, j: (0, j)),    # bias tile
        ]
        out_specs = pl.BlockSpec((tm, tn), lambda i, j: (i, j))
        scratch_shapes = []
        dim_sem = ("parallel", "parallel")
    else:
        kernel = _make_conv1d_kernel_multi(n_k, k_rem)
        grid = (pl.cdiv(M, tm), pl.cdiv(nf, tn), n_k)
        in_specs = [
            pl.BlockSpec((tm, tk), lambda i, j, k: (i, k)),  # x tile
            pl.BlockSpec((tk, tn), lambda i, j, k: (k, j)),  # W tile
            pl.BlockSpec((1, tn), lambda i, j, k: (0, j)),   # bias tile
        ]
        out_specs = pl.BlockSpec((tm, tn), lambda i, j, k: (i, j))
        scratch_shapes = [pltpu.VMEM((tm, tn), jnp.float32)]
        dim_sem = ("parallel", "parallel", "arbitrary")

    out2d = pl.pallas_call(
        kernel,
        out_shape=jax.ShapeDtypeStruct((M, nf), out_dtype),
        grid_spec=pltpu.PrefetchScalarGridSpec(
            num_scalar_prefetch=0,
            grid=grid,
            in_specs=in_specs,
            out_specs=out_specs,
            scratch_shapes=scratch_shapes,
        ),
        compiler_params=pltpu.CompilerParams(
            dimension_semantics=dim_sem,
            vmem_limit_bytes=vmem_limit,
        ),
        cost_estimate=cost,
    )(x2d, w, b2d)

    return out2d.reshape(*lead, nf)


# ---------------------------------------------------------------------------
# Self-test
# ---------------------------------------------------------------------------
if __name__ == "__main__":
    # --- small demo matching Conv1D semantics: weight ~ N(0, 0.02), bias = 0 ---
    nx, nf = 32, 64          # hidden in / hidden out
    batch, seq = 2, 8

    key = jax.random.PRNGKey(0)
    kx, kw = jax.random.split(key)

    x = jax.random.normal(kx, (batch, seq, nx), dtype=jnp.float32)
    weight = 0.02 * jax.random.normal(kw, (nx, nf), dtype=jnp.float32)
    bias = jnp.zeros((nf,), dtype=jnp.float32)

    y = conv1d(x, weight, bias)
    y = jax.block_until_ready(y)

    y_ref = (x.reshape(-1, nx) @ weight + bias).reshape(batch, seq, nf)
    assert y.shape == (batch, seq, nf)
    assert jnp.allclose(y, y_ref, atol=1e-5, rtol=1e-5)

    # --- second check: exercises the multi-K + tail-mask path (nx % tk != 0) ---
    nx2, nf2, M2 = 320, 256, 64
    k2 = jax.random.PRNGKey(0)
    ka, kb, kc = jax.random.split(k2, 3)
    x2 = jax.random.normal(ka, (M2, nx2), dtype=jnp.float32)
    w2 = 0.02 * jax.random.normal(kb, (nx2, nf2), dtype=jnp.float32)
    b2 = 0.1 * jax.random.normal(kc, (nf2,), dtype=jnp.float32)

    y2 = conv1d(x2, w2, b2, tk=128)          # 320 % 128 = 64 -> tail masked (last step only)
    y2 = jax.block_until_ready(y2)
    y2_ref = x2 @ w2 + b2
    assert jnp.allclose(y2, y2_ref, atol=1e-4, rtol=1e-4)

    # --- third check: recommended bf16 compute path (f32 accumulation) ---
    y3 = conv1d(x2, w2, b2, compute_dtype=jnp.bfloat16)
    y3 = jax.block_until_ready(y3)
    assert jnp.allclose(y3, y2_ref, atol=5e-2, rtol=5e-2)

    print("KERNEL_OK")
</pallas_src>

<mosaic_0001>
module attributes {stable_mosaic.version = 11 : i64} {
  func.func @_conv1d_kernel_single(%arg0: i32, %arg1: i32, %arg2: memref<16x32xf32, #tpu.memory_space<vmem>>, %arg3: memref<32x64xf32, #tpu.memory_space<vmem>>, %arg4: memref<1x64xf32, #tpu.memory_space<vmem>>, %arg5: memref<16x64xf32, #tpu.memory_space<vmem>>) attributes {dimension_semantics = [#tpu.dimension_semantics<parallel>, #tpu.dimension_semantics<parallel>], iteration_bounds = array<i64: 1, 1>, scalar_prefetch = 0 : i64, scratch_operands = 0 : i64, tpu.core_type = #tpu.core_type<tc>, window_params = [{transform_indices = @transform_0, window_bounds = array<i64: 16, 32>}, {transform_indices = @transform_1, window_bounds = array<i64: 32, 64>}, {transform_indices = @transform_2, window_bounds = array<i64: 1, 64>}, {transform_indices = @transform_3, window_bounds = array<i64: 16, 64>}]} {
    %c0 = arith.constant 0 : index
    %c0_0 = arith.constant 0 : index
    %0 = vector.load %arg2[%c0, %c0_0] : memref<16x32xf32, #tpu.memory_space<vmem>>, vector<16x32xf32>
    %c0_1 = arith.constant 0 : index
    %c0_2 = arith.constant 0 : index
    %1 = vector.load %arg3[%c0_1, %c0_2] : memref<32x64xf32, #tpu.memory_space<vmem>>, vector<32x64xf32>
    %cst = arith.constant dense<0.000000e+00> : vector<16x64xf32>
    %2 = tpu.matmul %0, %1, %cst {dimension_numbers = #tpu.dot_dimension_numbers<[1], [0], [0], [1], [0, 0, 1, 1], [], []>} : vector<16x32xf32>, vector<32x64xf32>, vector<16x64xf32> -> vector<16x64xf32>
    %c0_3 = arith.constant 0 : index
    %c0_4 = arith.constant 0 : index
    %3 = vector.load %arg4[%c0_3, %c0_4] : memref<1x64xf32, #tpu.memory_space<vmem>>, vector<1x64xf32>
    %4 = vector.broadcast %3 : vector<1x64xf32> to vector<16x64xf32>
    %5 = arith.addf %2, %4 : vector<16x64xf32>
    %c0_5 = arith.constant 0 : index
    %c0_6 = arith.constant 0 : index
    %6 = vector.load %arg5[%c0_5, %c0_6] : memref<16x64xf32, #tpu.memory_space<vmem>>, vector<16x64xf32>
    tpu.vector_store %arg5[%c0_5, %c0_6], %5 {strides = array<i32>} : memref<16x64xf32, #tpu.memory_space<vmem>>, vector<16x64xf32>,
    return
  }
  func.func @transform_0(%arg0: i32, %arg1: i32) -> (i32, i32) {
    %c0_i32 = arith.constant 0 : i32
    %c0_i32_0 = arith.constant 0 : i32
    return %arg0, %c0_i32 : i32, i32
  }
  func.func @transform_1(%arg0: i32, %arg1: i32) -> (i32, i32) {
    %c0_i32 = arith.constant 0 : i32
    %c0_i32_0 = arith.constant 0 : i32
    return %c0_i32, %arg1 : i32, i32
  }
  func.func @transform_2(%arg0: i32, %arg1: i32) -> (i32, i32) {
    %c0_i32 = arith.constant 0 : i32
    %c0_i32_0 = arith.constant 0 : i32
    return %c0_i32, %arg1 : i32, i32
  }
  func.func @transform_3(%arg0: i32, %arg1: i32) -> (i32, i32) {
    %c0_i32 = arith.constant 0 : i32
    return %arg0, %arg1 : i32, i32
  }
}

</mosaic_0001>

<llo_original>
// kernel: conv1d.1
$region0: #{conv1d.1}
  #allocation0 [shape = 'u32[]', space=smem, size = 0x4, offset = 0x4, fixed_abs, tag = 'smem constant byte address 0x4 - core index']
  #allocation1 [shape = 'u32[144,128]{1,0:T(1,128)}', space=vmem, size = 0x12000, scoped, tag = 'internal scratch']
  %s0 = inlined_call_operand.hbm [shape: f32[16,32], index: 0, kind: input, shape index: {}]
  %s1 = inlined_call_operand.hbm [shape: f32[32,64], index: 1, kind: input, shape index: {}]
  %s2 = inlined_call_operand.vmem [shape: f32[1,64], index: 2, kind: input, shape index: {}]
  %s3 = inlined_call_operand.hbm [shape: f32[16,64], index: 3, kind: output, shape index: {}]
  %s4 = sld [smem:[#allocation0]]
  $region30: #{conv1d.1} parent=0
    _
  %s6 = ssub.s32 1, %s4
  %s7 = scalar_select 0, %s6, %s4
  $region1: #{conv1d.1} parent=0
    #allocation2 [shape = 'u8[8192]{0}', space=vmem, size = 0x2000, scoped, tag = 'input window, operand 0, single buffered']
    #allocation3 [shape = 's32[1]{0}', space=sflag, size = 0x4, scoped, tag = 'scoped memory for conv1d.1']
    #allocation4 [shape = 's32[1]{0}', space=sflag, size = 0x4, scoped, tag = 'scoped memory for conv1d.1']
    #allocation5 [shape = 'u8[16384]{0}', space=vmem, size = 0x4000, scoped, tag = 'input window, operand 1, single buffered']
    #allocation6 [shape = 's32[1]{0}', space=sflag, size = 0x4, scoped, tag = 'scoped memory for conv1d.1']
    #allocation7 [shape = 'u8[8192]{0}', space=vmem, size = 0x2000, scoped, tag = 'output window, operand 0, single buffered']
    %8 = vsyncpa [#allocation3], 0
    %9 = vsyncpa [#allocation6], 0
    %10 = vsyncpa [#allocation4], 0
    // Predicated region
    $region2: #{conv1d.1} parent=1 // pred_check
      _
    $region3: #{conv1d.1} parent=1 // pred_check_branch
      %12 = sbr.rel (0) target = $region5
    $region4: #{conv1d.1} parent=1 // pred_region
      %s14 = ssub.s32 256, 256
      %15 = vsyncadd [#allocation3], %s14
      %s16 = sshll.u32 [#allocation2], 4
      %s17 = int_to_ptr.vmem [resolvable:$true] %s16
      %22 = dma.hbm_to_vmem [thread:$0]  %s0, 256, %s17, [#allocation3], 128, 128, 8
    $region5: #{conv1d.1} parent=1 // pred_fallthru
      _
    // Predicated region
    $region6: #{conv1d.1} parent=1 // pred_check
      _
    $region7: #{conv1d.1} parent=1 // pred_check_branch
      %24 = sbr.rel (0) target = $region9
    $region8: #{conv1d.1} parent=1 // pred_region
      %s26 = ssub.s32 512, 512
      %27 = vsyncadd [#allocation6], %s26
      %s28 = sshll.u32 [#allocation5], 4
      %s29 = int_to_ptr.vmem [resolvable:$true] %s28
      %34 = dma.hbm_to_vmem [thread:$0]  %s1, 512, %s29, [#allocation6], 128, 128, 8
    $region9: #{conv1d.1} parent=1 // pred_fallthru
      _
    // Predicated region
    $region10: #{conv1d.1} parent=1 // pred_check
      _
    $region11: #{conv1d.1} parent=1 // pred_check_branch
      %36 = sbr.rel (0) target = $region13
    $region12: #{conv1d.1} parent=1 // pred_region
      _
    $region13: #{conv1d.1} parent=1 // pred_fallthru
      _
    // Predicated region
    $region14: #{conv1d.1} parent=1 // pred_check
      _
    $region15: #{conv1d.1} parent=1 // pred_check_branch
      %38 = sbr.rel (0) target = $region17
    $region16: #{conv1d.1} parent=1 // pred_region
      %39 = dma.done [#allocation3], 256
    $region17: #{conv1d.1} parent=1 // pred_fallthru
      _
    // Predicated region
    $region18: #{conv1d.1} parent=1 // pred_check
      _
    $region19: #{conv1d.1} parent=1 // pred_check_branch
      %41 = sbr.rel (0) target = $region21
    $region20: #{conv1d.1} parent=1 // pred_region
      %42 = dma.done [#allocation6], 512
    $region21: #{conv1d.1} parent=1 // pred_fallthru
      _
    %v43 = vld [vmem:[#allocation2] sm:$0xff]
    %v44 = vld [vmem:[#allocation2 + $0x8] sm:$0xff]
    %v45 = vld [vmem:[#allocation5] sm:$0xff]
    %v46 = vld [vmem:[#allocation5 + $0x8] sm:$0xff]
    %v47 = vld [vmem:[#allocation5 + $0x10] sm:$0xff]
    %v48 = vld [vmem:[#allocation5 + $0x18] sm:$0xff]
    %v49 = vld [vmem:[%s2] sm:$0x1]
    %v51 = vlaneseq
    %v52 = vshrl.u32 %v51, 7
    %v53 = vsub.s32 0, %v52
    %v54 = vrot.slane %v49, %v53
    %vm56 = vcmask 261120
    %v58 = vsel %vm56, %v43, 0
    %v61 = vsel %vm56, %v44, 0
    %63 = vmatprep.subr.mxu0 0.0
    %64 = vmatpush1.msra.mxu0 0.0
    %65 = vmatprep.subr.mxu0 0.0
    %66 = vmatpush1.msra.mxu0 0.0
    %67 = vmatprep.subr.mxu0 0.0
    %68 = vmatpush1.msra.mxu0 0.0
    %69 = vmatprep.subr.mxu0 0.0
    %70 = vmatpush1.msra.mxu0 0.0
    %71 = vmatprep.subr.mxu0 0.0
    %72 = vmatpush1.msra.mxu0 0.0
    %73 = vmatprep.subr.mxu0 0.0
    %74 = vmatpush1.msra.mxu0 0.0
    %75 = vmatprep.subr.mxu0 0.0
    %76 = vmatpush1.msra.mxu0 0.0
    %77 = vmatprep.subr.mxu0 0.0
    %78 = vmatpush1.msra.mxu0 0.0
    %79 = vmatprep.subr.mxu0 0.0
    %80 = vmatpush1.msra.mxu0 0.0
    %81 = vmatprep.subr.mxu0 0.0
    %82 = vmatpush1.msra.mxu0 0.0
    %83 = vmatprep.subr.mxu0 0.0
    %84 = vmatpush1.msra.mxu0 0.0
    %85 = vmatprep.subr.mxu0 0.0
    %86 = vmatpush1.msra.mxu0 0.0
    %87 = vmatprep.subr.mxu0 0.0
    %88 = vmatpush1.msra.mxu0 %v48
    %89 = vmatprep.subr.mxu0 0.0
    %90 = vmatpush1.msra.mxu0 %v47
    %91 = vmatprep.subr.mxu0 0.0
    %92 = vmatpush1.msra.mxu0 %v46
    %93 = vmatprep.subr.mxu0 0.0
    %94 = vmatpush1.msra.mxu0 %v45
    %95 = vmatprep.subr.mxu0 0.0
    %96 = vmatpush2.msra.mxu0 0.0
    %97 = vmatprep.subr.mxu0 0.0
    %98 = vmatpush2.msra.mxu0 0.0
    %99 = vmatprep.subr.mxu0 0.0
    %100 = vmatpush2.msra.mxu0 0.0
    %101 = vmatprep.subr.mxu0 0.0
    %102 = vmatpush2.msra.mxu0 0.0
    %103 = vmatprep.subr.mxu0 0.0
    %104 = vmatpush2.msra.mxu0 0.0
    %105 = vmatprep.subr.mxu0 0.0
    %106 = vmatpush2.msra.mxu0 0.0
    %107 = vmatprep.subr.mxu0 0.0
    %108 = vmatpush2.msra.mxu0 0.0
    %109 = vmatprep.subr.mxu0 0.0
    %110 = vmatpush2.msra.mxu0 0.0
    %111 = vmatprep.subr.mxu0 0.0
    %112 = vmatpush2.msra.mxu0 0.0
    %113 = vmatprep.subr.mxu0 0.0
    %114 = vmatpush2.msra.mxu0 0.0
    %115 = vmatprep.subr.mxu0 0.0
    %116 = vmatpush2.msra.mxu0 0.0
    %117 = vmatprep.subr.mxu0 0.0
    %118 = vmatpush2.msra.mxu0 0.0
    %119 = vmatprep.subr.mxu0 0.0
    %120 = vmatpush2.msra.mxu0 0.0
    %121 = vmatprep.subr.mxu0 0.0
    %122 = vmatpush2.msra.mxu0 0.0
    %123 = vmatprep.subr.mxu0 0.0
    %124 = vmatpush2.msra.mxu0 0.0
    %125 = vmatprep.subr.mxu0 0.0
    %126 = vmatpush2.msra.mxu0 0.0
    %127 = vmatprep.mubr.f32.mxu0 0.0
    %128 = vmatmul.mubr.f32.gmra.mxu0 %v58
    %v129 = vpop.f32.mrf.mxu0
    %v130 = vadd.f32 %v54, %v129
    %v131 = vpop.f32.mrf.mxu0
    %132 = vmatprep.mubr.f32.mxu0 0.0
    %133 = vmatmul.mubr.f32.gmra.mxu0 %v61
    %v134 = vpop.f32.mrf.mxu0
    %v135 = vadd.f32 %v54, %v134
    %v136 = vpop.f32.mrf.mxu0
    %137 = vdwg.mxu0
    %vm138 = vcmask 523264
    %139 = vst.msk [vmem:[#allocation7] sm:$0xff] %vm138, %v130
    %140 = vst.msk [vmem:[#allocation7 + $0x8] sm:$0xff] %vm138, %v135
    // Predicated region
    $region22: #{conv1d.1} parent=1 // pred_check
      _
    $region23: #{conv1d.1} parent=1 // pred_check_branch
      %142 = sbr.rel (0) target = $region25
    $region24: #{conv1d.1} parent=1 // pred_region
      %s144 = ssub.s32 256, 256
      %145 = vsyncadd [#allocation4], %s144
      %s146 = sshll.u32 [#allocation7], 4
      %s147 = int_to_ptr.vmem [resolvable:$true] %s146
      %152 = dma.vmem_to_hbm [thread:$0]  %s147, 256, %s3, [#allocation4], 128, 128, 8
    $region25: #{conv1d.1} parent=1 // pred_fallthru
      _
    // Predicated region
    $region26: #{conv1d.1} parent=1 // pred_check
      _
    $region27: #{conv1d.1} parent=1 // pred_check_branch
      %154 = sbr.rel (0) target = $region29
    $region28: #{conv1d.1} parent=1 // pred_region
      %155 = dma.done [#allocation4], 256
    $region29: #{conv1d.1} parent=1 // pred_fallthru
      _
    %156 = vsyncpa [#allocation3], 1
    %157 = vsyncpa [#allocation6], 1
    %158 = vsyncpa [#allocation4], 1

</llo_original>
